<compile_context>
chip_gen: v5e
topology: v5e:2x2
jax: 0.10.0
libtpu: 0.0.40
codegen_flags: <defaults>
</compile_context>

<pallas_src>
import functools

import jax
import jax.numpy as jnp
from jax import lax
from jax.experimental import pallas as pl
from jax.experimental.pallas import tpu as pltpu


def _ernie_disperse_kernel(embs_ref, conv_w_ref, w_fused_ref, b_fused_ref,
                           out_ref, *, chunk):
    """Fused sequence-pool + output/var heads for one batch tile."""
    TB, S, E = embs_ref.shape

    def pool_chunk(s0, length):
        # Per-chunk upcast keeps vreg live ranges small (no whole-block f32
        # temporary); the VPU work hides under the embs HBM->VMEM DMA.
        xc = embs_ref[:, pl.ds(s0, length), :].astype(jnp.float32)   # (TB, c, E)
        wc = conv_w_ref[pl.ds(s0, length), :]                        # (c, 1) f32
        return jnp.sum(xc * wc[None, :, :], axis=1)                  # (TB, E) f32

    num_full = S // chunk
    rem = S - num_full * chunk

    acc = jnp.zeros((TB, E), dtype=jnp.float32)
    if num_full <= 8:
        # Short sequence: fully static chunk starts (cheapest lowering).
        for c in range(num_full):
            acc = acc + pool_chunk(c * chunk, chunk)
    else:
        # Long sequence: rolled loop over sublane-aligned dynamic chunks.
        def body(c, a):
            s0 = pl.multiple_of(c * chunk, chunk)
            return a + pool_chunk(s0, chunk)
        acc = lax.fori_loop(0, num_full, body, acc)
    if rem > 0:
        acc = acc + pool_chunk(num_full * chunk, rem)

    # Fused output/var heads: single MXU matmul against the pre-transposed,
    # lane-padded weight; conv_b is already folded into b_fused on the host.
    fused = jnp.dot(acc, w_fused_ref[...],
                    preferred_element_type=jnp.float32) + b_fused_ref[...]
    out_ref[...] = fused.astype(out_ref.dtype)


def _vmem_capacity_bytes():
    try:
        return int(pltpu.get_tpu_info().vmem_capacity_bytes)
    except Exception:
        return 64 * 1024 * 1024   # conservative fallback (v7x per-TensorCore)


def _pick_batch_tile(batch, seq, emb, itemsize, target_bytes):
    """Largest batch tile whose embs block fits the per-buffer VMEM target,
    while guaranteeing multiple grid steps when the batch allows (keeps the
    DMA pipeline busy and lets the "parallel" axis shard across v7x's 2 TCs)."""
    row_bytes = seq * emb * itemsize
    tb = max(1, target_bytes // row_bytes)

    if batch >= 4 * 8:
        steps = 4
    elif batch >= 2 * 8:
        steps = 2
    else:
        steps = 1
    if steps > 1:
        cap = max(8, (((batch + steps - 1) // steps) // 8) * 8)
        tb = min(tb, cap)

    if tb >= batch:
        return int(batch)                              # full dim: always legal
    return int(min(batch, max(8, (tb // 8) * 8)))      # keep output sublanes full


def ernie_disperse_forward(embs, conv_w, conv_b, out_w, out_b, var_w, var_b,
                           batch_tile=None):
    """Fused sequence-pool + output/var heads.  embs: (B, S, E)."""
    B, S, E = embs.shape
    output_size = out_w.shape[0]
    k = var_w.shape[0]
    n_tot = output_size + k
    n_pad = ((n_tot + 127) // 128) * 128               # lane-dense fused output

    # ---- one-time host-side parameter massaging (no in-kernel transposes) ---
    w_fused = jnp.concatenate([out_w, var_w], axis=0).astype(jnp.float32)
    w_fused = jnp.pad(w_fused, ((0, n_pad - n_tot), (0, 0))).T         # (E, n_pad)
    b_fused = jnp.concatenate([out_b.reshape(-1), var_b.reshape(-1)])
    b_fused = jnp.pad(b_fused.astype(jnp.float32), (0, n_pad - n_tot))
    b_fused = b_fused.reshape(1, n_pad)                                # (1, n_pad)
    # Fold conv_b into the head bias:  (acc + b)@W == acc@W + b*colsum(W).
    conv_b_scalar = conv_b.reshape(()).astype(jnp.float32)
    b_fused = b_fused + conv_b_scalar * jnp.sum(w_fused, axis=0, keepdims=True)
    conv_w_col = conv_w.reshape(S, 1).astype(jnp.float32)              # (S, 1)

    itemsize = jnp.dtype(embs.dtype).itemsize
    # Sublane-packing-aligned chunk: f32 -> 8, bf16 -> 16, int8/fp8 -> 32.
    chunk = 8 * max(1, 4 // itemsize)

    # ---- generation-aware VMEM budgeting --------------------------------
    vmem_cap = _vmem_capacity_bytes()
    if vmem_cap <= 96 * 1024 * 1024:
        target_bytes = vmem_cap // 8      # v7x-class (64 MiB): ~8 MiB / buffer
    else:
        target_bytes = vmem_cap // 5      # v5e/v6e (128 MiB): ~25 MiB / buffer

    if batch_tile is None:
        TB = _pick_batch_tile(B, S, E, itemsize, target_bytes)
    else:
        TB = int(min(B, batch_tile))
    n_steps = (B + TB - 1) // TB
    grid = (n_steps,)

    # VMEM accounting: double-buffered embs/out tiles, resident params (x2 for
    # conservative buffering), the (TB, E) f32 pooling accumulator, per-chunk
    # f32 product temps (x2 for live-range slack) and Mosaic internal scratch.
    embs_tile_bytes = TB * S * E * itemsize
    out_tile_bytes = TB * n_pad * 4
    param_bytes = S * 4 + (E * n_pad + n_pad) * 4
    acc_bytes = TB * E * 4
    chunk_tmp_bytes = TB * min(chunk, S) * E * 4
    needed = (2 * (embs_tile_bytes + out_tile_bytes) + 2 * param_bytes
              + acc_bytes + 2 * chunk_tmp_bytes + 4 * 1024 * 1024)
    vmem_limit = int(min(int(0.75 * vmem_cap), max(16 * 1024 * 1024, needed)))

    cost = pl.CostEstimate(
        flops=2 * B * S * E + 2 * B * E * n_pad,
        transcendentals=0,
        bytes_accessed=B * S * E * itemsize + param_bytes + B * n_pad * 4,
    )

    # 3-deep embs pipeline only where VMEM is plentiful (v5e/v6e) and there are
    # enough grid steps for it to matter; v7x keeps the default 2-deep.
    embs_extra = {}
    if vmem_cap > 96 * 1024 * 1024 and n_steps >= 3:
        embs_extra = dict(pipeline_mode=pl.Buffered(3))

    fused = pl.pallas_call(
        functools.partial(_ernie_disperse_kernel, chunk=chunk),
        out_shape=jax.ShapeDtypeStruct((B, n_pad), jnp.float32),
        grid=grid,
        in_specs=[
            pl.BlockSpec((TB, S, E), lambda i: (i, 0, 0), **embs_extra),  # streamed
            pl.BlockSpec((S, 1), lambda i: (0, 0)),        # pooling weight column
            pl.BlockSpec((E, n_pad), lambda i: (0, 0)),    # fused head weight
            pl.BlockSpec((1, n_pad), lambda i: (0, 0)),    # fused head bias
        ],
        out_specs=pl.BlockSpec((TB, n_pad), lambda i: (i, 0)),
        compiler_params=pltpu.CompilerParams(
            dimension_semantics=("parallel",),
            vmem_limit_bytes=vmem_limit,
        ),
        cost_estimate=cost,
    )(embs, conv_w_col, w_fused, b_fused)

    output = fused[:, :output_size]
    var = fused[:, output_size:n_tot]
    return output, var


def reference_forward(embs, conv_w, conv_b, out_w, out_b, var_w, var_b):
    pooled = jnp.einsum('bse,s->be', embs, conv_w[0]) + conv_b[0, 0]
    output = pooled @ out_w.T + out_b[0]
    var = pooled @ var_w.T + var_b[0]
    return output, var


if __name__ == "__main__":
    # Small, module-consistent shapes.
    B = 2             # batch
    S = 8             # config.seq_len (max_len)
    E = 32            # config.emb_size
    OUTPUT_SIZE = 16  # output_size
    K = 4             # config.class_num

    key = jax.random.PRNGKey(0)
    k_embs, k_cw, k_cb, k_ow, k_ob, k_vw, k_vb = jax.random.split(key, 7)

    # "Last hidden state" from the (external) ERNIE encoder.
    embs = jax.random.normal(k_embs, (B, S, E), dtype=jnp.float32)

    # Parameter shapes follow nn.Linear: weight (out, in), bias (out,).
    conv_w = jax.random.normal(k_cw, (1, S), dtype=jnp.float32) * 0.1   # Linear(S, 1).weight
    conv_b = jax.random.normal(k_cb, (1, 1), dtype=jnp.float32) * 0.1   # Linear(S, 1).bias
    out_w = jax.random.normal(k_ow, (OUTPUT_SIZE, E), dtype=jnp.float32) * 0.1
    out_b = jax.random.normal(k_ob, (1, OUTPUT_SIZE), dtype=jnp.float32) * 0.1
    var_w = jax.random.normal(k_vw, (K, E), dtype=jnp.float32) * 0.1
    var_b = jax.random.normal(k_vb, (1, K), dtype=jnp.float32) * 0.1

    output, var = ernie_disperse_forward(embs, conv_w, conv_b,
                                         out_w, out_b, var_w, var_b)
    output = jax.block_until_ready(output)
    var = jax.block_until_ready(var)

    ref_output, ref_var = reference_forward(embs, conv_w, conv_b,
                                            out_w, out_b, var_w, var_b)
    assert output.shape == (B, OUTPUT_SIZE)
    assert var.shape == (B, K)
    assert jnp.allclose(output, ref_output, atol=1e-4, rtol=1e-4)
    assert jnp.allclose(var, ref_var, atol=1e-4, rtol=1e-4)

    # Ragged / multi-step grid test: B not a multiple of the batch tile, so the
    # last output block is partially masked and the grid has 2 steps.
    B2 = 10
    embs2 = jax.random.normal(jax.random.PRNGKey(1), (B2, S, E), dtype=jnp.float32)
    out2, var2 = ernie_disperse_forward(embs2, conv_w, conv_b,
                                        out_w, out_b, var_w, var_b,
                                        batch_tile=8)
    out2 = jax.block_until_ready(out2)
    var2 = jax.block_until_ready(var2)
    ref_out2, ref_var2 = reference_forward(embs2, conv_w, conv_b,
                                           out_w, out_b, var_w, var_b)
    assert out2.shape == (B2, OUTPUT_SIZE) and var2.shape == (B2, K)
    assert jnp.allclose(out2, ref_out2, atol=1e-4, rtol=1e-4)
    assert jnp.allclose(var2, ref_var2, atol=1e-4, rtol=1e-4)

    # Non-chunk-multiple sequence length: exercises the chunked accumulation
    # (2 full 8-row chunks + a 4-row remainder) with no whole-block f32 temp.
    S3, B3 = 20, 4
    embs3 = jax.random.normal(jax.random.PRNGKey(2), (B3, S3, E), dtype=jnp.float32)
    conv_w3 = jax.random.normal(jax.random.PRNGKey(3), (1, S3), dtype=jnp.float32) * 0.1
    out3, var3 = ernie_disperse_forward(embs3, conv_w3, conv_b,
                                        out_w, out_b, var_w, var_b)
    out3 = jax.block_until_ready(out3)
    var3 = jax.block_until_ready(var3)
    ref_out3, ref_var3 = reference_forward(embs3, conv_w3, conv_b,
                                           out_w, out_b, var_w, var_b)
    assert jnp.allclose(out3, ref_out3, atol=1e-4, rtol=1e-4)
    assert jnp.allclose(var3, ref_var3, atol=1e-4, rtol=1e-4)

    print("KERNEL_OK")
</pallas_src>

<mosaic_0001>
module attributes {stable_mosaic.version = 11 : i64} {
  func.func @_ernie_disperse_kernel(%arg0: i32, %arg1: memref<2x8x32xf32, #tpu.memory_space<vmem>>, %arg2: memref<8x1xf32, #tpu.memory_space<vmem>>, %arg3: memref<32x128xf32, #tpu.memory_space<vmem>>, %arg4: memref<1x128xf32, #tpu.memory_space<vmem>>, %arg5: memref<2x128xf32, #tpu.memory_space<vmem>>) attributes {dimension_semantics = [#tpu.dimension_semantics<parallel>], iteration_bounds = array<i64: 1>, scalar_prefetch = 0 : i64, scratch_operands = 0 : i64, tpu.core_type = #tpu.core_type<tc>, window_params = [{transform_indices = @transform_0, window_bounds = array<i64: 2, 8, 32>}, {pipeline_mode = #tpu.pipeline_mode<synchronous>, transform_indices = @transform_1, window_bounds = array<i64: 8, 1>}, {pipeline_mode = #tpu.pipeline_mode<synchronous>, transform_indices = @transform_2, window_bounds = array<i64: 32, 128>}, {pipeline_mode = #tpu.pipeline_mode<synchronous>, transform_indices = @transform_3, window_bounds = array<i64: 1, 128>}, {transform_indices = @transform_4, window_bounds = array<i64: 2, 128>}]} {
    %cst = arith.constant 0.000000e+00 : f32
    %0 = vector.broadcast %cst : f32 to vector<2x32xf32>
    %c0 = arith.constant 0 : index
    %c0_0 = arith.constant 0 : index
    %c0_1 = arith.constant 0 : index
    %1 = vector.load %arg1[%c0, %c0_0, %c0_1] : memref<2x8x32xf32, #tpu.memory_space<vmem>>, vector<2x8x32xf32>
    %c0_2 = arith.constant 0 : index
    %c0_3 = arith.constant 0 : index
    %2 = vector.load %arg2[%c0_2, %c0_3] : memref<8x1xf32, #tpu.memory_space<vmem>>, vector<8x1xf32>
    %3 = vector.shape_cast %2 : vector<8x1xf32> to vector<1x8x1xf32>
    %4 = vector.broadcast %3 : vector<1x8x1xf32> to vector<2x8x32xf32>
    %5 = arith.mulf %1, %4 : vector<2x8x32xf32>
    %cst_4 = arith.constant dense<0.000000e+00> : vector<2x32xf32>
    %6 = vector.multi_reduction <add>, %5, %cst_4 [1] : vector<2x8x32xf32> to vector<2x32xf32>
    %7 = arith.addf %0, %6 : vector<2x32xf32>
    %c0_5 = arith.constant 0 : index
    %c0_6 = arith.constant 0 : index
    %8 = vector.load %arg3[%c0_5, %c0_6] : memref<32x128xf32, #tpu.memory_space<vmem>>, vector<32x128xf32>
    %cst_7 = arith.constant dense<0.000000e+00> : vector<2x128xf32>
    %9 = tpu.matmul %7, %8, %cst_7 {dimension_numbers = #tpu.dot_dimension_numbers<[1], [0], [0], [1], [0, 0, 1, 1], [], []>} : vector<2x32xf32>, vector<32x128xf32>, vector<2x128xf32> -> vector<2x128xf32>
    %c0_8 = arith.constant 0 : index
    %c0_9 = arith.constant 0 : index
    %10 = vector.load %arg4[%c0_8, %c0_9] : memref<1x128xf32, #tpu.memory_space<vmem>>, vector<1x128xf32>
    %11 = vector.broadcast %10 : vector<1x128xf32> to vector<2x128xf32>
    %12 = arith.addf %9, %11 : vector<2x128xf32>
    %c0_10 = arith.constant 0 : index
    %c0_11 = arith.constant 0 : index
    %13 = vector.load %arg5[%c0_10, %c0_11] : memref<2x128xf32, #tpu.memory_space<vmem>>, vector<2x128xf32>
    tpu.vector_store %arg5[%c0_10, %c0_11], %12 {strides = array<i32>} : memref<2x128xf32, #tpu.memory_space<vmem>>, vector<2x128xf32>,
    return
  }
  func.func @transform_0(%arg0: i32) -> (i32, i32, i32) {
    %c0_i32 = arith.constant 0 : i32
    %c0_i32_0 = arith.constant 0 : i32
    %c0_i32_1 = arith.constant 0 : i32
    return %arg0, %c0_i32, %c0_i32_0 : i32, i32, i32
  }
  func.func @transform_1(%arg0: i32) -> (i32, i32) {
    %c0_i32 = arith.constant 0 : i32
    %c0_i32_0 = arith.constant 0 : i32
    %c0_i32_1 = arith.constant 0 : i32
    return %c0_i32, %c0_i32_0 : i32, i32
  }
  func.func @transform_2(%arg0: i32) -> (i32, i32) {
    %c0_i32 = arith.constant 0 : i32
    %c0_i32_0 = arith.constant 0 : i32
    %c0_i32_1 = arith.constant 0 : i32
    return %c0_i32, %c0_i32_0 : i32, i32
  }
  func.func @transform_3(%arg0: i32) -> (i32, i32) {
    %c0_i32 = arith.constant 0 : i32
    %c0_i32_0 = arith.constant 0 : i32
    %c0_i32_1 = arith.constant 0 : i32
    return %c0_i32, %c0_i32_0 : i32, i32
  }
  func.func @transform_4(%arg0: i32) -> (i32, i32) {
    %c0_i32 = arith.constant 0 : i32
    %c0_i32_0 = arith.constant 0 : i32
    return %arg0, %c0_i32 : i32, i32
  }
}

</mosaic_0001>

<llo_original>
// kernel: tpu_custom_call.1
$region0: #{tpu_custom_call.1}
  #allocation0 [shape = 'u32[]', space=smem, size = 0x4, offset = 0x4, fixed_abs, tag = 'smem constant byte address 0x4 - core index']
  #allocation1 [shape = 'u32[72,128]{1,0:T(1,128)}', space=vmem, size = 0x9000, scoped, tag = 'internal scratch']
  %s0 = inlined_call_operand.hbm [shape: f32[2,8,32], index: 0, kind: input, shape index: {}]
  %s1 = inlined_call_operand.vmem [shape: f32[8,1], index: 1, kind: input, shape index: {}]
  %s2 = inlined_call_operand.hbm [shape: f32[32,128], index: 2, kind: input, shape index: {}]
  %s3 = inlined_call_operand.vmem [shape: f32[1,128], index: 3, kind: input, shape index: {}]
  %s4 = inlined_call_operand.hbm [shape: f32[2,128], index: 4, kind: output, shape index: {}]
  %s5 = sld [smem:[#allocation0]]
  $region34: #{tpu_custom_call.1} parent=0
    _
  %s7 = ssub.s32 1, %s5
  %s8 = scalar_select 0, %s7, %s5
  $region1: #{tpu_custom_call.1} parent=0
    #allocation2 [shape = 'u8[8192]{0}', space=vmem, size = 0x2000, scoped, tag = 'input window, operand 0, single buffered']
    #allocation3 [shape = 's32[1]{0}', space=sflag, size = 0x4, scoped, tag = 'scoped memory for tpu_custom_call.1']
    #allocation4 [shape = 's32[1]{0}', space=sflag, size = 0x4, scoped, tag = 'scoped memory for tpu_custom_call.1']
    #allocation5 [shape = 'u8[16384]{0}', space=vmem, size = 0x4000, scoped, tag = 'input window, operand 2, single buffered']
    #allocation6 [shape = 's32[1]{0}', space=sflag, size = 0x4, scoped, tag = 'scoped memory for tpu_custom_call.1']
    #allocation7 [shape = 'u8[1024]{0}', space=vmem, size = 0x400, scoped, tag = 'output window, operand 0, single buffered']
    %9 = vsyncpa [#allocation3], 0
    %10 = vsyncpa [#allocation6], 0
    %11 = vsyncpa [#allocation4], 0
    // Predicated region
    $region2: #{tpu_custom_call.1} parent=1 // pred_check
      _
    $region3: #{tpu_custom_call.1} parent=1 // pred_check_branch
      %13 = sbr.rel (0) target = $region5
    $region4: #{tpu_custom_call.1} parent=1 // pred_region
      %15 = vsyncadd [#allocation3], 0
      %s16 = sshll.u32 %s0, 4
      %s17 = int_to_ptr.hbm [resolvable:$true] %s16
      %s18 = sshll.u32 [#allocation2], 4
      %s19 = int_to_ptr.vmem [resolvable:$true] %s18
      %24 = dma.hbm_to_vmem [thread:$0]  %s17, 256, %s19, [#allocation3], 128, 128, 8
    $region5: #{tpu_custom_call.1} parent=1 // pred_fallthru
      _
    // Predicated region
    $region6: #{tpu_custom_call.1} parent=1 // pred_check
      _
    $region7: #{tpu_custom_call.1} parent=1 // pred_check_branch
      %26 = sbr.rel (0) target = $region9
    $region8: #{tpu_custom_call.1} parent=1 // pred_region
      _
    $region9: #{tpu_custom_call.1} parent=1 // pred_fallthru
      _
    // Predicated region
    $region10: #{tpu_custom_call.1} parent=1 // pred_check
      _
    $region11: #{tpu_custom_call.1} parent=1 // pred_check_branch
      %28 = sbr.rel (0) target = $region13
    $region12: #{tpu_custom_call.1} parent=1 // pred_region
      %30 = vsyncadd [#allocation6], 0
      %s31 = sshll.u32 %s2, 4
      %s32 = int_to_ptr.hbm [resolvable:$true] %s31
      %s33 = sshll.u32 [#allocation5], 4
      %s34 = int_to_ptr.vmem [resolvable:$true] %s33
      %39 = dma.hbm_to_vmem [thread:$0]  %s32, 512, %s34, [#allocation6], 128, 128, 8
    $region13: #{tpu_custom_call.1} parent=1 // pred_fallthru
      _
    // Predicated region
    $region14: #{tpu_custom_call.1} parent=1 // pred_check
      _
    $region15: #{tpu_custom_call.1} parent=1 // pred_check_branch
      %41 = sbr.rel (0) target = $region17
    $region16: #{tpu_custom_call.1} parent=1 // pred_region
      _
    $region17: #{tpu_custom_call.1} parent=1 // pred_fallthru
      _
    // Predicated region
    $region18: #{tpu_custom_call.1} parent=1 // pred_check
      _
    $region19: #{tpu_custom_call.1} parent=1 // pred_check_branch
      %43 = sbr.rel (0) target = $region21
    $region20: #{tpu_custom_call.1} parent=1 // pred_region
      %45 = dma.done [#allocation3], 256
    $region21: #{tpu_custom_call.1} parent=1 // pred_fallthru
      _
    // Predicated region
    $region22: #{tpu_custom_call.1} parent=1 // pred_check
      _
    $region23: #{tpu_custom_call.1} parent=1 // pred_check_branch
      %47 = sbr.rel (0) target = $region25
    $region24: #{tpu_custom_call.1} parent=1 // pred_region
      %49 = dma.done [#allocation6], 512
    $region25: #{tpu_custom_call.1} parent=1 // pred_fallthru
      _
    %v50 = vld [vmem:[#allocation2] sm:$0xff]
    %v51 = vld [vmem:[#allocation2 + $0x8] sm:$0xff]
    %v52 = vld [vmem:[%s1] sm:$0xff]
    %54 = vset.pattern.permute.xlu0 0
    %55 = vperm.xlu0 %54, %v52
    %v56 = vpop.permute.xlu0 %55
    %v58 = vmul.f32 %v50, %v56
    %v59 = vmul.f32 %v51, %v56
    %vm60 = vcmask 261120
    %v61 = vsel %vm60, %v58, 0.0
    %v62 = vrot.slane %v61, 4
    %v63 = vadd.f32 %v61, %v62
    %v64 = vrot.slane %v63, 2
    %v65 = vadd.f32 %v63, %v64
    %v66 = vrot.slane %v65, 1
    %v67 = vadd.f32 %v65, %v66
    %v68 = vsel %vm60, %v59, 0.0
    %v69 = vrot.slane %v68, 4
    %v70 = vadd.f32 %v68, %v69
    %v71 = vrot.slane %v70, 2
    %v72 = vadd.f32 %v70, %v71
    %v73 = vrot.slane %v72, 1
    %v74 = vadd.f32 %v72, %v73
    %v75 = vadd.f32 %v67, 0.0
    %v76 = vadd.f32 %v74, 0.0
    %v77 = vld [vmem:[#allocation5] sm:$0xff]
    %v78 = vld [vmem:[#allocation5 + $0x8] sm:$0xff]
    %v79 = vld [vmem:[#allocation5 + $0x10] sm:$0xff]
    %v80 = vld [vmem:[#allocation5 + $0x18] sm:$0xff]
    %v81 = vld [vmem:[%s3] sm:$0x1]
    %v83 = vperm.slane %v81, 0
    %vm87 = vcmask 1041409
    %v88 = vsel %vm87, %v76, %v75
    %v89 = vsel %vm60, %v88, 0
    %91 = vmatpush.msra.mxu0 0.0
    %92 = vmatpush.msra.mxu0 0.0
    %93 = vmatpush.msra.mxu0 0.0
    %94 = vmatpush.msra.mxu0 0.0
    %95 = vmatpush.msra.mxu0 0.0
    %96 = vmatpush.msra.mxu0 0.0
    %97 = vmatpush.msra.mxu0 0.0
    %98 = vmatpush.msra.mxu0 0.0
    %99 = vmatpush.msra.mxu0 0.0
    %100 = vmatpush.msra.mxu0 0.0
    %101 = vmatpush.msra.mxu0 0.0
    %102 = vmatpush.msra.mxu0 0.0
    %103 = vmatpush.msra.mxu0 %v80
    %104 = vmatpush.msra.mxu0 %v79
    %105 = vmatpush.msra.mxu0 %v78
    %106 = vmatpush.msra.mxu0 %v77
    %107 = vmatmul.f32.gmra.mxu0 %v89
    %v108 = vpop.f32.mrf.mxu0
    %v109 = vadd.f32 %v83, %v108
    %110 = vdwg.mxu0
    %111 = vst [vmem:[#allocation7] sm:$0x3] %v109
    // Predicated region
    $region26: #{tpu_custom_call.1} parent=1 // pred_check
      _
    $region27: #{tpu_custom_call.1} parent=1 // pred_check_branch
      %113 = sbr.rel (0) target = $region29
    $region28: #{tpu_custom_call.1} parent=1 // pred_region
      %115 = vsyncadd [#allocation4], 0
      %s117 = sshll.u32 [#allocation7], 4
      %s118 = int_to_ptr.vmem [resolvable:$true] %s117
      %s119 = sshll.u32 %s4, 4
      %s120 = int_to_ptr.hbm [resolvable:$true] %s119
      %122 = dma.vmem_to_hbm [thread:$0]  %s118, 32, %s120, [#allocation4]
    $region29: #{tpu_custom_call.1} parent=1 // pred_fallthru
      _
    // Predicated region
    $region30: #{tpu_custom_call.1} parent=1 // pred_check
      _
    $region31: #{tpu_custom_call.1} parent=1 // pred_check_branch
      %124 = sbr.rel (0) target = $region33
    $region32: #{tpu_custom_call.1} parent=1 // pred_region
      %126 = dma.done [#allocation4], 32
    $region33: #{tpu_custom_call.1} parent=1 // pred_fallthru
      _
    %127 = vsyncpa [#allocation3], 1
    %128 = vsyncpa [#allocation6], 1
    %129 = vsyncpa [#allocation4], 1

</llo_original>
